<compile_context>
chip_gen: v5e
topology: v5e:2x2
jax: 0.10.0
libtpu: 0.0.40
codegen_flags: <defaults>
</compile_context>

<pallas_src>
import functools

import jax
import jax.numpy as jnp
from jax.experimental import pallas as pl
from jax.experimental.pallas import tpu as pltpu

_TARGET_TILE_BYTES = 8 << 20   # ~8 MiB per tile -> ~32 MiB live with double-buffered in+out
_VMEM_LIMIT_BYTES = 48 << 20   # above v5e/v6e default scoped limits, below v7x 64 MiB physical
_LANE_CANDIDATES = (1024, 512, 256, 128)


def _copy_kernel(x_ref, o_ref):
    # Identity copy of one lane/sublane-dense tile. The reorg (as defined by the
    # reference module) is a pure view, so element order is unchanged; correctness
    # lives in the surrounding (free) reshapes.
    o_ref[...] = x_ref[...]


def _round_down_to_8(x: int) -> int:
    return max(8, (x // 8) * 8)


def _pick_block_rows(rows: int, lane_w: int, itemsize: int) -> int:
    """Byte-sized tile selection + multi-step-grid guarantee."""
    target_rows = max(1, _TARGET_TILE_BYTES // (lane_w * itemsize))
    block_rows = min(rows, _round_down_to_8(target_rows))
    # Guarantee >=2 (>=4 when possible) grid steps so input-fetch / output-writeback
    # DMAs overlap and v7x's two TensorCores both get work on this BW-bound copy.
    if rows >= 16:
        min_steps = 4 if rows >= 32 else 2
        block_rows = min(block_rows, _round_down_to_8(pl.cdiv(rows, min_steps)))
    return block_rows


def _dense_tiled_copy(flat: jax.Array) -> jax.Array:
    """Copy a flat 1D buffer through VMEM using lane-dense (block_rows, lane_w) tiles."""
    n = flat.shape[0]
    lane_w = next((c for c in _LANE_CANDIDATES if n % c == 0), None)
    if lane_w is None:
        # TODO(synk): padding costs one extra XLA copy; a 1D chunked BlockSpec with a
        # masked trailing block would avoid it, but padding keeps every store lane-dense.
        pad = (-n) % _LANE_CANDIDATES[0]
        return _dense_tiled_copy(jnp.pad(flat, (0, pad)))[:n]

    rows = n // lane_w
    x2d = flat.reshape(rows, lane_w)
    block_rows = _pick_block_rows(rows, lane_w, int(jnp.dtype(flat.dtype).itemsize))

    out2d = pl.pallas_call(
        _copy_kernel,
        out_shape=jax.ShapeDtypeStruct((rows, lane_w), flat.dtype),
        grid_spec=pltpu.PrefetchScalarGridSpec(
            num_scalar_prefetch=0,
            grid=(pl.cdiv(rows, block_rows),),
            in_specs=[pl.BlockSpec((block_rows, lane_w), lambda i: (i, 0))],
            out_specs=pl.BlockSpec((block_rows, lane_w), lambda i: (i, 0)),
        ),
        compiler_params=pltpu.CompilerParams(
            dimension_semantics=("parallel",),
            vmem_limit_bytes=_VMEM_LIMIT_BYTES,
        ),
        input_output_aliases={0: 0},  # identity copy: alias input slab into output
    )(x2d)
    return out2d.reshape(n)


def reorg_forward(x: jax.Array, stride: int = 2, use_pallas_copy: bool = True) -> jax.Array:
    """ReorgLayer forward. x: (B, C, H, W) NCHW -> (B, C*s*s, H//s, W//s).

    Matches the reference PyTorch module, whose forward is a pure .view()
    (row-major reshape), NOT a space-to-depth permutation.
    """
    b, c, h, w = x.shape
    assert h % stride == 0 and w % stride == 0
    out_shape = (b, c * stride * stride, h // stride, w // stride)

    if not use_pallas_copy:
        # Production path: the op is a free metadata reshape (zero HBM traffic).
        return x.reshape(out_shape)

    flat = x.reshape(-1)  # row-major flatten (matches torch .view semantics)
    return _dense_tiled_copy(flat).reshape(out_shape)


if __name__ == "__main__":
    key = jax.random.PRNGKey(0)
    # Small NCHW input consistent with the module: batch=2, channels=4, 16x16.
    x = jax.random.normal(key, (2, 4, 16, 16), dtype=jnp.float32)
    stride = 2

    fwd = jax.jit(functools.partial(reorg_forward, stride=stride, use_pallas_copy=True))
    out = jax.block_until_ready(fwd(x))

    # Reference: torch's .view == row-major reshape (no permutation).
    ref = x.reshape(2, 4 * stride * stride, 16 // stride, 16 // stride)
    assert out.shape == (2, 16, 8, 8), out.shape
    assert out.dtype == x.dtype
    assert jnp.array_equal(out, ref)

    print("KERNEL_OK")
</pallas_src>

<mosaic_0001>
module attributes {stable_mosaic.version = 11 : i64} {
  func.func @_copy_kernel(%arg0: i32, %arg1: memref<2x1024xf32, #tpu.memory_space<vmem>>, %arg2: memref<2x1024xf32, #tpu.memory_space<vmem>>) attributes {dimension_semantics = [#tpu.dimension_semantics<parallel>], iteration_bounds = array<i64: 1>, scalar_prefetch = 0 : i64, scratch_operands = 0 : i64, tpu.core_type = #tpu.core_type<tc>, window_params = [{transform_indices = @transform_0, window_bounds = array<i64: 2, 1024>}, {transform_indices = @transform_1, window_bounds = array<i64: 2, 1024>}]} {
    %c0 = arith.constant 0 : index
    %c0_0 = arith.constant 0 : index
    %0 = vector.load %arg1[%c0, %c0_0] : memref<2x1024xf32, #tpu.memory_space<vmem>>, vector<2x1024xf32>
    %c0_1 = arith.constant 0 : index
    %c0_2 = arith.constant 0 : index
    %1 = vector.load %arg2[%c0_1, %c0_2] : memref<2x1024xf32, #tpu.memory_space<vmem>>, vector<2x1024xf32>
    tpu.vector_store %arg2[%c0_1, %c0_2], %0 {strides = array<i32>} : memref<2x1024xf32, #tpu.memory_space<vmem>>, vector<2x1024xf32>,
    return
  }
  func.func @transform_0(%arg0: i32) -> (i32, i32) {
    %c0_i32 = arith.constant 0 : i32
    %c0_i32_0 = arith.constant 0 : i32
    return %arg0, %c0_i32 : i32, i32
  }
  func.func @transform_1(%arg0: i32) -> (i32, i32) {
    %c0_i32 = arith.constant 0 : i32
    %c0_i32_0 = arith.constant 0 : i32
    return %arg0, %c0_i32 : i32, i32
  }
}

</mosaic_0001>

<llo_original>
// kernel: reorg_forward.1
$region0: #{reorg_forward.1}
  #allocation0 [shape = 'u32[]', space=smem, size = 0x4, offset = 0x4, fixed_abs, tag = 'smem constant byte address 0x4 - core index']
  #allocation1 [shape = 'u32[72,128]{1,0:T(1,128)}', space=vmem, size = 0x9000, scoped, tag = 'internal scratch']
  %s0 = inlined_call_operand.vmem [shape: f32[2,1024], index: 0, kind: input, shape index: {}, may-alias: {0,1}]
  %s1 = inlined_call_operand.vmem [shape: f32[2,1024], index: 1, kind: output, shape index: {}, may-alias: {0,1}]
  %s2 = sld [smem:[#allocation0]]
  $region14: #{reorg_forward.1} parent=0
    _
  %s4 = ssub.s32 1, %s2
  %s5 = scalar_select 0, %s4, %s2
  // Predicated region
  $region2: #{reorg_forward.1} parent=0 // pred_check
    _
  $region3: #{reorg_forward.1} parent=0 // pred_check_branch
    %7 = sbr.rel (0) target = $region5
  $region4: #{reorg_forward.1} parent=0 // pred_region
    _
  $region5: #{reorg_forward.1} parent=0 // pred_fallthru
    _
  %v8 = vld [vmem:[%s0] sm:$0xff]
  %v9 = vld [vmem:[%s0 + $0x8] sm:$0xff]
  %10 = vst [vmem:[%s1] sm:$0xff] %v8
  %11 = vst [vmem:[%s1 + $0x8] sm:$0xff] %v9
  // Predicated region
  $region6: #{reorg_forward.1} parent=0 // pred_check
    _
  $region7: #{reorg_forward.1} parent=0 // pred_check_branch
    %13 = sbr.rel (0) target = $region9
  $region8: #{reorg_forward.1} parent=0 // pred_region
    _
  $region9: #{reorg_forward.1} parent=0 // pred_fallthru
    _
  // Predicated region
  $region10: #{reorg_forward.1} parent=0 // pred_check
    _
  $region11: #{reorg_forward.1} parent=0 // pred_check_branch
    %15 = sbr.rel (0) target = $region13
  $region12: #{reorg_forward.1} parent=0 // pred_region
    _
  $region13: #{reorg_forward.1} parent=0 // pred_fallthru
    _

</llo_original>
